<compile_context>
chip_gen: v7x
topology: tpu7x:2x2x1
jax: 0.10.0
libtpu: 0.0.40
codegen_flags: <defaults>
</compile_context>

<pallas_src>
import functools

import jax
import jax.numpy as jnp
from jax.experimental import pallas as pl
from jax.experimental.pallas import tpu as pltpu

LN_EPS = 1e-5


def _round_up(n, m):
    return ((n + m - 1) // m) * m


# ---------------------------------------------------------------------------
# Kernel: one row-tile of (tm, Dp) through  linear -> ReLU -> linear ->
# residual -> LayerNorm, entirely in VMEM.
# ---------------------------------------------------------------------------
def _ffn_kernel(d_real, d_pad, x_ref, w1_ref, b1_ref, w2_ref, vec_ref, o_ref):
    x = x_ref[...]                                       # (tm, Dp) compute dtype
    xf = x.astype(jnp.float32)

    # linear 1 + ReLU (f32 MXU accumulation)
    h = jnp.dot(x, w1_ref[...], preferred_element_type=jnp.float32)
    h = jnp.maximum(h + b1_ref[...], 0.0)

    # linear 2 + conv2 bias + residual (all in f32)
    y = jnp.dot(h.astype(w2_ref.dtype), w2_ref[...],
                preferred_element_type=jnp.float32)
    y = y + vec_ref[0:1, :] + xf

    # LayerNorm over the real feature width D.  Padded lanes are explicitly
    # masked out of the statistics, so correctness does not depend on the
    # zero-padded-weights invariant; variance uses the two-pass form.
    inv_d = 1.0 / d_real
    if d_pad != d_real:
        mask = jax.lax.broadcasted_iota(jnp.int32, (1, d_pad), 1) < d_real
        y = jnp.where(mask, y, 0.0)
    mu = jnp.sum(y, axis=-1, keepdims=True) * inv_d
    yc = y - mu
    if d_pad != d_real:
        yc = jnp.where(mask, yc, 0.0)
    var = jnp.sum(yc * yc, axis=-1, keepdims=True) * inv_d
    o_ref[...] = (yc * jax.lax.rsqrt(var + LN_EPS) * vec_ref[1:2, :]
                  + vec_ref[2:3, :]).astype(o_ref.dtype)


# ---------------------------------------------------------------------------
# One-time parameter preparation (padding / packing / casting) — hoisted out
# of the per-forward path.
# ---------------------------------------------------------------------------
def prepare_ffn_params(params, *, compute_dtype=jnp.bfloat16):
    D, H = params['w1'].shape
    Dp, Hp = _round_up(D, 128), _round_up(H, 128)
    f32 = jnp.float32
    w1 = jnp.pad(params['w1'].astype(f32), ((0, Dp - D), (0, Hp - H)))
    w2 = jnp.pad(params['w2'].astype(f32), ((0, Hp - H), (0, Dp - D)))
    b1 = jnp.pad(params['b1'].astype(f32), (0, Hp - H)).reshape(1, Hp)
    # Pack conv2-bias / LN-gamma / LN-beta into one lane-dense (3, Dp) array.
    vec = jnp.stack([
        jnp.pad(params['b2'].astype(f32), (0, Dp - D)),
        jnp.pad(params['gamma'].astype(f32), (0, Dp - D)),
        jnp.pad(params['beta'].astype(f32), (0, Dp - D)),
    ], axis=0)
    return dict(
        w1=w1.astype(compute_dtype),   # (Dp, Hp) MXU operand
        w2=w2.astype(compute_dtype),   # (Hp, Dp) MXU operand
        b1=b1,                         # (1, Hp) f32 — added on the f32 accum
        vec=vec,                       # (3, Dp) f32 — [b2; gamma; beta]
        d_in=D,
    )


# ---------------------------------------------------------------------------
# Forward wrapper: layout plumbing + pallas_call.
# ---------------------------------------------------------------------------
def ffn_forward(x, prepared, *, tile_m=512):
    B, L, D = x.shape
    assert prepared['d_in'] == D, "prepared params do not match input feature dim"
    w1, b1, w2, vec = prepared['w1'], prepared['b1'], prepared['w2'], prepared['vec']
    Dp, Hp = w1.shape
    compute_dtype = w1.dtype
    cbytes = jnp.dtype(compute_dtype).itemsize

    # --- row tiling: big tiles amortize per-step pipeline overhead ---------
    granule = 16 if cbytes < 4 else 8            # bf16 native sublane tile is 16
    M = B * L
    tm = min(_round_up(tile_m, granule), _round_up(M, granule))
    # Keep >=4 grid steps (>=2 blocks per TensorCore on v7x megacore) when M
    # allows it, so both cores get work and DMA/compute overlap survives.
    while tm > granule and pl.cdiv(M, tm) < 4:
        tm = max(granule, _round_up(tm // 2, granule))
    Mp = _round_up(M, tm)
    grid = (Mp // tm,)

    # --- activation layout: pad only when the shapes actually need it -------
    x2 = x.reshape(M, D)
    if x2.dtype != compute_dtype:
        x2 = x2.astype(compute_dtype)
    if Mp != M or Dp != D:
        x2 = jnp.pad(x2, ((0, Mp - M), (0, Dp - D)))

    # --- weight buffering / VMEM budget -------------------------------------
    weight_bytes = (Dp * Hp + Hp * Dp) * cbytes
    # Constant index_map => weights are DMA'd once either way; single-buffer
    # them only when double-buffering would hurt the VMEM budget (v7x: 64 MiB).
    weight_mode = pl.Buffered(1) if weight_bytes > (8 << 20) else None
    wbufs = 1 if weight_mode is not None else 2
    vmem_est = (2 * tm * Dp * cbytes             # x tiles (double-buffered)
                + 2 * tm * Dp * 4                # out tiles (double-buffered f32)
                + wbufs * weight_bytes           # resident weights
                + 2 * (Hp + 3 * Dp) * 4          # b1 / [b2; gamma; beta]
                + tm * (Hp + Dp) * 4)            # h / y live f32 temporaries
    vmem_limit = int(min(max(2 * vmem_est, 32 << 20), 100 << 20))

    flops = 4 * Mp * Dp * Hp                     # two matmuls
    bytes_accessed = (Mp * Dp * (cbytes + 4)     # x in + out (f32)
                      + weight_bytes + (Hp + 3 * Dp) * 4)

    kernel = functools.partial(_ffn_kernel, D, Dp)

    out = pl.pallas_call(
        kernel,
        out_shape=jax.ShapeDtypeStruct((Mp, Dp), x.dtype),
        grid=grid,
        in_specs=[
            pl.BlockSpec((tm, Dp), lambda i: (i, 0)),            # x row tile
            pl.BlockSpec((Dp, Hp), lambda i: (0, 0),
                         pipeline_mode=weight_mode),             # w1 (resident)
            pl.BlockSpec((1, Hp), lambda i: (0, 0)),             # b1
            pl.BlockSpec((Hp, Dp), lambda i: (0, 0),
                         pipeline_mode=weight_mode),             # w2 (resident)
            pl.BlockSpec((3, Dp), lambda i: (0, 0)),             # [b2; gamma; beta]
        ],
        out_specs=pl.BlockSpec((tm, Dp), lambda i: (i, 0)),
        compiler_params=pltpu.CompilerParams(
            dimension_semantics=("parallel",),
            vmem_limit_bytes=vmem_limit),
        cost_estimate=pl.CostEstimate(
            flops=flops, transcendentals=Mp, bytes_accessed=bytes_accessed),
    )(x2, w1, b1, w2, vec)

    if Mp != M or Dp != D:
        out = out[:M, :D]
    return out.reshape(B, L, D)


# ---------------------------------------------------------------------------
# Parameter construction (Conv1d(k=1) weights stored transposed for
# right-multiplication: (d_in, d_hid) and (d_hid, d_in)).
# ---------------------------------------------------------------------------
def init_ffn_params(key, d_in, d_hid):
    k1, k2, k3, k4 = jax.random.split(key, 4)
    b1 = 1.0 / (d_in ** 0.5)
    b2 = 1.0 / (d_hid ** 0.5)
    f32 = jnp.float32
    return dict(
        w1=jax.random.uniform(k1, (d_in, d_hid), f32, -b1, b1),
        b1=jax.random.uniform(k2, (d_hid,), f32, -b1, b1),
        w2=jax.random.uniform(k3, (d_hid, d_in), f32, -b2, b2),
        b2=jax.random.uniform(k4, (d_in,), f32, -b2, b2),
        gamma=jnp.ones((d_in,), f32),
        beta=jnp.zeros((d_in,), f32),
    )


# ---------------------------------------------------------------------------
# Pure-JAX reference (mirrors the torch forward, dropout in eval mode).
# ---------------------------------------------------------------------------
def _reference(x, p):
    h = jnp.maximum(jnp.einsum('bld,dh->blh', x, p['w1']) + p['b1'], 0.0)
    y = jnp.einsum('blh,hd->bld', h, p['w2']) + p['b2']
    y = y + x
    mu = jnp.mean(y, axis=-1, keepdims=True)
    var = jnp.mean((y - mu) ** 2, axis=-1, keepdims=True)
    return (y - mu) * jax.lax.rsqrt(var + LN_EPS) * p['gamma'] + p['beta']


if __name__ == "__main__":
    d_in, d_hid = 32, 64
    B, L = 2, 8

    key = jax.random.PRNGKey(0)
    kx, kp = jax.random.split(key)
    x = jax.random.normal(kx, (B, L, d_in), jnp.float32)
    params = init_ffn_params(kp, d_in, d_hid)
    ref = _reference(x, params)

    # f32 compute path: exact-math check against the pure-JAX reference.
    out_f32 = ffn_forward(x, prepare_ffn_params(params, compute_dtype=jnp.float32))
    jax.block_until_ready(out_f32)
    assert out_f32.shape == (B, L, d_in)
    err32 = float(jnp.max(jnp.abs(out_f32 - ref)))
    assert jnp.allclose(out_f32, ref, atol=1e-4, rtol=1e-4), err32

    # bf16 MXU path (performance default): looser tolerance for bf16 operands.
    out_bf16 = ffn_forward(x, prepare_ffn_params(params))
    jax.block_until_ready(out_bf16)
    errbf = float(jnp.max(jnp.abs(out_bf16 - ref)))
    assert jnp.allclose(out_bf16, ref, atol=5e-2, rtol=5e-2), errbf

    print("KERNEL_OK")
</pallas_src>

<mosaic_0001>
module attributes {stable_mosaic.version = 11 : i64} {
  func.func @_ffn_kernel(%arg0: i32, %arg1: memref<8x128xf32, #tpu.memory_space<vmem>>, %arg2: memref<128x128xf32, #tpu.memory_space<vmem>>, %arg3: memref<1x128xf32, #tpu.memory_space<vmem>>, %arg4: memref<128x128xf32, #tpu.memory_space<vmem>>, %arg5: memref<3x128xf32, #tpu.memory_space<vmem>>, %arg6: memref<8x128xf32, #tpu.memory_space<vmem>>) attributes {dimension_semantics = [#tpu.dimension_semantics<parallel>], iteration_bounds = array<i64: 2>, scalar_prefetch = 0 : i64, scratch_operands = 0 : i64, tpu.core_type = #tpu.core_type<tc>, window_params = [{transform_indices = @transform_0, window_bounds = array<i64: 8, 128>}, {pipeline_mode = #tpu.pipeline_mode<synchronous>, transform_indices = @transform_1, window_bounds = array<i64: 128, 128>}, {pipeline_mode = #tpu.pipeline_mode<synchronous>, transform_indices = @transform_2, window_bounds = array<i64: 1, 128>}, {pipeline_mode = #tpu.pipeline_mode<synchronous>, transform_indices = @transform_3, window_bounds = array<i64: 128, 128>}, {pipeline_mode = #tpu.pipeline_mode<synchronous>, transform_indices = @transform_4, window_bounds = array<i64: 3, 128>}, {transform_indices = @transform_5, window_bounds = array<i64: 8, 128>}]} {
    %c0 = arith.constant 0 : index
    %c0_0 = arith.constant 0 : index
    %0 = vector.load %arg1[%c0, %c0_0] : memref<8x128xf32, #tpu.memory_space<vmem>>, vector<8x128xf32>
    %c0_1 = arith.constant 0 : index
    %c0_2 = arith.constant 0 : index
    %1 = vector.load %arg2[%c0_1, %c0_2] : memref<128x128xf32, #tpu.memory_space<vmem>>, vector<128x128xf32>
    %cst = arith.constant dense<0.000000e+00> : vector<8x128xf32>
    %2 = tpu.matmul %0, %1, %cst {dimension_numbers = #tpu.dot_dimension_numbers<[1], [0], [0], [1], [0, 0, 1, 1], [], []>} : vector<8x128xf32>, vector<128x128xf32>, vector<8x128xf32> -> vector<8x128xf32>
    %c0_3 = arith.constant 0 : index
    %c0_4 = arith.constant 0 : index
    %3 = vector.load %arg3[%c0_3, %c0_4] : memref<1x128xf32, #tpu.memory_space<vmem>>, vector<1x128xf32>
    %4 = vector.broadcast %3 : vector<1x128xf32> to vector<8x128xf32>
    %5 = arith.addf %2, %4 : vector<8x128xf32>
    %cst_5 = arith.constant 0.000000e+00 : f32
    %6 = vector.broadcast %cst_5 : f32 to vector<8x128xf32>
    %7 = arith.maximumf %5, %6 : vector<8x128xf32>
    %c0_6 = arith.constant 0 : index
    %c0_7 = arith.constant 0 : index
    %8 = vector.load %arg4[%c0_6, %c0_7] : memref<128x128xf32, #tpu.memory_space<vmem>>, vector<128x128xf32>
    %cst_8 = arith.constant dense<0.000000e+00> : vector<8x128xf32>
    %9 = tpu.matmul %7, %8, %cst_8 {dimension_numbers = #tpu.dot_dimension_numbers<[1], [0], [0], [1], [0, 0, 1, 1], [], []>} : vector<8x128xf32>, vector<128x128xf32>, vector<8x128xf32> -> vector<8x128xf32>
    %c0_9 = arith.constant 0 : index
    %c0_10 = arith.constant 0 : index
    %10 = vector.load %arg5[%c0_9, %c0_10] : memref<3x128xf32, #tpu.memory_space<vmem>>, vector<1x128xf32>
    %11 = vector.broadcast %10 : vector<1x128xf32> to vector<8x128xf32>
    %12 = arith.addf %9, %11 : vector<8x128xf32>
    %13 = arith.addf %12, %0 : vector<8x128xf32>
    %14 = tpu.iota {dimensions = array<i32: 1>} : vector<1x128xi32>
    %c32_i32 = arith.constant 32 : i32
    %15 = vector.broadcast %c32_i32 : i32 to vector<1x128xi32>
    %16 = arith.cmpi slt, %14, %15 : vector<1x128xi32>
    %cst_11 = arith.constant 0.000000e+00 : f32
    %17 = vector.shape_cast %16 : vector<1x128xi1> to vector<1x128xi1>
    %18 = vector.broadcast %17 : vector<1x128xi1> to vector<8x128xi1>
    %19 = vector.broadcast %cst_11 : f32 to vector<8x128xf32>
    %20 = arith.select %18, %13, %19 : vector<8x128xi1>, vector<8x128xf32>
    %cst_12 = arith.constant dense<0.000000e+00> : vector<8xf32>
    %21 = vector.multi_reduction <add>, %20, %cst_12 [1] : vector<8x128xf32> to vector<8xf32>
    %22 = vector.shape_cast %21 : vector<8xf32> to vector<8x1xf32>
    %cst_13 = arith.constant 3.125000e-02 : f32
    %23 = vector.broadcast %cst_13 : f32 to vector<8x1xf32>
    %24 = arith.mulf %22, %23 : vector<8x1xf32>
    %25 = vector.broadcast %24 : vector<8x1xf32> to vector<8x128xf32>
    %26 = arith.subf %20, %25 : vector<8x128xf32>
    %cst_14 = arith.constant 0.000000e+00 : f32
    %27 = vector.shape_cast %16 : vector<1x128xi1> to vector<1x128xi1>
    %28 = vector.broadcast %27 : vector<1x128xi1> to vector<8x128xi1>
    %29 = vector.broadcast %cst_14 : f32 to vector<8x128xf32>
    %30 = arith.select %28, %26, %29 : vector<8x128xi1>, vector<8x128xf32>
    %31 = arith.mulf %30, %30 : vector<8x128xf32>
    %cst_15 = arith.constant dense<0.000000e+00> : vector<8xf32>
    %32 = vector.multi_reduction <add>, %31, %cst_15 [1] : vector<8x128xf32> to vector<8xf32>
    %33 = vector.shape_cast %32 : vector<8xf32> to vector<8x1xf32>
    %cst_16 = arith.constant 3.125000e-02 : f32
    %34 = vector.broadcast %cst_16 : f32 to vector<8x1xf32>
    %35 = arith.mulf %33, %34 : vector<8x1xf32>
    %cst_17 = arith.constant 9.99999974E-6 : f32
    %36 = vector.broadcast %cst_17 : f32 to vector<8x1xf32>
    %37 = arith.addf %35, %36 : vector<8x1xf32>
    %38 = math.rsqrt %37 : vector<8x1xf32>
    %39 = vector.broadcast %38 : vector<8x1xf32> to vector<8x128xf32>
    %40 = arith.mulf %30, %39 : vector<8x128xf32>
    %c1 = arith.constant 1 : index
    %c0_18 = arith.constant 0 : index
    %41 = vector.load %arg5[%c1, %c0_18] : memref<3x128xf32, #tpu.memory_space<vmem>>, vector<1x128xf32>
    %42 = vector.broadcast %41 : vector<1x128xf32> to vector<8x128xf32>
    %43 = arith.mulf %40, %42 : vector<8x128xf32>
    %c2 = arith.constant 2 : index
    %c0_19 = arith.constant 0 : index
    %44 = vector.load %arg5[%c2, %c0_19] : memref<3x128xf32, #tpu.memory_space<vmem>>, vector<1x128xf32>
    %45 = vector.broadcast %44 : vector<1x128xf32> to vector<8x128xf32>
    %46 = arith.addf %43, %45 : vector<8x128xf32>
    %c0_20 = arith.constant 0 : index
    %c0_21 = arith.constant 0 : index
    %47 = vector.load %arg6[%c0_20, %c0_21] : memref<8x128xf32, #tpu.memory_space<vmem>>, vector<8x128xf32>
    tpu.vector_store %arg6[%c0_20, %c0_21], %46 {strides = array<i32>} : memref<8x128xf32, #tpu.memory_space<vmem>>, vector<8x128xf32>,
    return
  }
  func.func @transform_0(%arg0: i32) -> (i32, i32) {
    %c0_i32 = arith.constant 0 : i32
    %c0_i32_0 = arith.constant 0 : i32
    return %arg0, %c0_i32 : i32, i32
  }
  func.func @transform_1(%arg0: i32) -> (i32, i32) {
    %c0_i32 = arith.constant 0 : i32
    %c0_i32_0 = arith.constant 0 : i32
    %c0_i32_1 = arith.constant 0 : i32
    return %c0_i32, %c0_i32_0 : i32, i32
  }
  func.func @transform_2(%arg0: i32) -> (i32, i32) {
    %c0_i32 = arith.constant 0 : i32
    %c0_i32_0 = arith.constant 0 : i32
    %c0_i32_1 = arith.constant 0 : i32
    return %c0_i32, %c0_i32_0 : i32, i32
  }
  func.func @transform_3(%arg0: i32) -> (i32, i32) {
    %c0_i32 = arith.constant 0 : i32
    %c0_i32_0 = arith.constant 0 : i32
    %c0_i32_1 = arith.constant 0 : i32
    return %c0_i32, %c0_i32_0 : i32, i32
  }
  func.func @transform_4(%arg0: i32) -> (i32, i32) {
    %c0_i32 = arith.constant 0 : i32
    %c0_i32_0 = arith.constant 0 : i32
    %c0_i32_1 = arith.constant 0 : i32
    return %c0_i32, %c0_i32_0 : i32, i32
  }
  func.func @transform_5(%arg0: i32) -> (i32, i32) {
    %c0_i32 = arith.constant 0 : i32
    %c0_i32_0 = arith.constant 0 : i32
    return %arg0, %c0_i32 : i32, i32
  }
}

</mosaic_0001>

<llo_original>
// kernel: tpu_custom_call.1
$region0: #{tpu_custom_call.1}
  #allocation0 [shape = 'u32[]', space=smem, size = 0x4, offset = 0x4, fixed_abs, tag = 'smem constant byte address 0x4 - core index']
  #allocation1 [shape = 'u32[144,128]{1,0:T(1,128)}', space=vmem, size = 0x12000, scoped, tag = 'internal scratch']
  %s0 = inlined_call_operand.hbm [shape: f32[16,128], index: 0, kind: input, shape index: {}]
  %s1 = inlined_call_operand.hbm [shape: f32[128,128], index: 1, kind: input, shape index: {}]
  %s2 = inlined_call_operand.vmem [shape: f32[1,128], index: 2, kind: input, shape index: {}]
  %s3 = inlined_call_operand.hbm [shape: f32[128,128], index: 3, kind: input, shape index: {}]
  %s4 = inlined_call_operand.vmem [shape: f32[3,128], index: 4, kind: input, shape index: {}]
  %s5 = inlined_call_operand.hbm [shape: f32[16,128], index: 5, kind: output, shape index: {}]
  %s6 = sld [smem:[#allocation0]]
  $region65: #{tpu_custom_call.1} parent=0
    _
  %s8 = ssub.s32 1, %s6
  %s9 = scalar_select 0, %s8, %s6
  $region1: #{tpu_custom_call.1} parent=0
    #allocation2 [shape = 'u8[8192]{0}', space=vmem, size = 0x2000, scoped, tag = 'input window, operand 0']
    #allocation3 [shape = 's32[2]{0}', space=sflag, size = 0x8, scoped, tag = 'scoped memory for tpu_custom_call.1']
    #allocation4 [shape = 's32[2]{0}', space=sflag, size = 0x8, scoped, tag = 'scoped memory for tpu_custom_call.1']
    #allocation5 [shape = 'u8[65536]{0}', space=vmem, size = 0x10000, scoped, tag = 'input window, operand 1, single buffered']
    #allocation6 [shape = 's32[1]{0}', space=sflag, size = 0x4, scoped, tag = 'scoped memory for tpu_custom_call.1']
    #allocation7 [shape = 'u8[65536]{0}', space=vmem, size = 0x10000, scoped, tag = 'input window, operand 3, single buffered']
    #allocation8 [shape = 'u8[8192]{0}', space=vmem, size = 0x2000, scoped, tag = 'output window, operand 0']
    %10 = vsyncpa [#allocation3], 0
    %s11 = scalar_lea.sflag [#allocation3], 1
    %12 = vsyncpa %s11, 0
    %13 = vsyncpa [#allocation6], 0
    %14 = vsyncpa [#allocation4], 0
    %s15 = scalar_lea.sflag [#allocation4], 1
    %16 = vsyncpa %s15, 0
    loop: start=0, step=1, limit=4
    $region2: #{tpu_custom_call.1} parent=1 // loop_pre_header
      _
    $region3: #{tpu_custom_call.1} parent=1 // loop_header
      %s18 = sphi 0, %s22
      %p19 = scmp.ge.s32.totalorder %s18, 4
      %s28 = sphi 0, %s30
      %s31 = sphi 0, %s28
      %s32 = sphi 0, %s31
      %s48 = sphi 0, %s32
      %s52 = sphi 0, %s52
      %s54 = sphi 0, %s52
      %s55 = sphi 0, %s54
      %s69 = sphi 0, %s55
      %s73 = sphi 0, %s73
      %s75 = sphi 0, %s73
      %s76 = sphi 0, %s75
      %s90 = sphi 0, %s76
      %s94 = sphi 0, %s94
      %s96 = sphi 0, %s94
      %s97 = sphi 0, %s96
      %s111 = sphi 0, %s97
      %s115 = sphi 0, %s115
      %s117 = sphi 0, %s115
      %s118 = sphi 0, %s117
      %s132 = sphi 0, %s118
      %s138 = sphi 0, %s140
      %s141 = sphi 0, %s138
      %s142 = sphi 0, %s141
      %s158 = sphi 0, %s142
    $region4: #{tpu_custom_call.1} parent=1 // loop_header_branch
      %21 = sbr.rel (%p19) target = $region8
    $region5: #{tpu_custom_call.1} parent=1 // loop_body
      %s23 = ssub.s32 %s18, 1
      %s24 = ssub.s32 %s18, 2
      %s25 = sadd.s32 %s18, 1
      %s26 = ssub.s32 %s18, %s25
      %p27 = scmp.eq.s32.totalorder %s26, 0
      %s29 = sadd.s32 %s28, 1
      %s30 = scalar_select %p27, %s28, %s29
      %p33 = pneg %p27
      %p34 = scmp.eq.s32.totalorder %s18, 1
      %p35 = por %p33, %p34
      %p36 = scmp.ne.s32.totalorder %s28, %s31
      %p37 = scmp.eq.s32.totalorder %s18, 0
      %p38 = por %p36, %p37
      %p39 = scmp.ne.s32.totalorder %s28, %s31
      %p40 = scmp.eq.s32.totalorder %s23, 1
      %p41 = por %p39, %p40
      %p42 = scmp.ne.s32.totalorder %s31, %s32
      %p43 = scmp.eq.s32.totalorder %s23, 0
      %p44 = por %p42, %p43
      %p45 = scmp.ne.s32.totalorder %s31, %s32
      %p46 = scmp.eq.s32.totalorder %s24, 1
      %p47 = por %p45, %p46
      %p49 = scmp.ne.s32.totalorder %s32, %s48
      %p50 = scmp.eq.s32.totalorder %s24, 0
      %p51 = por %p49, %p50
      %s53 = sadd.s32 %s52, 1
      %p56 = scmp.eq.s32.totalorder %s18, 1
      %p57 = scmp.ne.s32.totalorder %s52, %s54
      %p58 = scmp.eq.s32.totalorder %s18, 0
      %p59 = por %p57, %p58
      %p60 = scmp.ne.s32.totalorder %s52, %s54
      %p61 = scmp.eq.s32.totalorder %s23, 1
      %p62 = por %p60, %p61
      %p63 = scmp.ne.s32.totalorder %s54, %s55
      %p64 = scmp.eq.s32.totalorder %s23, 0
      %p65 = por %p63, %p64
      %p66 = scmp.ne.s32.totalorder %s54, %s55
      %p67 = scmp.eq.s32.totalorder %s24, 1
      %p68 = por %p66, %p67
      %p70 = scmp.ne.s32.totalorder %s55, %s69
      %p71 = scmp.eq.s32.totalorder %s24, 0
      %p72 = por %p70, %p71
      %s74 = sadd.s32 %s73, 1
      %p77 = scmp.eq.s32.totalorder %s18, 1
      %p78 = scmp.ne.s32.totalorder %s73, %s75
      %p79 = scmp.eq.s32.totalorder %s18, 0
      %p80 = por %p78, %p79
      %p81 = scmp.ne.s32.totalorder %s73, %s75
      %p82 = scmp.eq.s32.totalorder %s23, 1
      %p83 = por %p81, %p82
      %p84 = scmp.ne.s32.totalorder %s75, %s76
      %p85 = scmp.eq.s32.totalorder %s23, 0
      %p86 = por %p84, %p85
      %p87 = scmp.ne.s32.totalorder %s75, %s76
      %p88 = scmp.eq.s32.totalorder %s24, 1
      %p89 = por %p87, %p88
      %p91 = scmp.ne.s32.totalorder %s76, %s90
      %p92 = scmp.eq.s32.totalorder %s24, 0
      %p93 = por %p91, %p92
      %s95 = sadd.s32 %s94, 1
      %p98 = scmp.eq.s32.totalorder %s18, 1
      %p99 = scmp.ne.s32.totalorder %s94, %s96
      %p100 = scmp.eq.s32.totalorder %s18, 0
      %p101 = por %p99, %p100
      %p102 = scmp.ne.s32.totalorder %s94, %s96
      %p103 = scmp.eq.s32.totalorder %s23, 1
      %p104 = por %p102, %p103
      %p105 = scmp.ne.s32.totalorder %s96, %s97
      %p106 = scmp.eq.s32.totalorder %s23, 0
      %p107 = por %p105, %p106
      %p108 = scmp.ne.s32.totalorder %s96, %s97
      %p109 = scmp.eq.s32.totalorder %s24, 1
      %p110 = por %p108, %p109
      %p112 = scmp.ne.s32.totalorder %s97, %s111
      %p113 = scmp.eq.s32.totalorder %s24, 0
      %p114 = por %p112, %p113
      %s116 = sadd.s32 %s115, 1
      %p119 = scmp.eq.s32.totalorder %s18, 1
      %p120 = scmp.ne.s32.totalorder %s115, %s117
      %p121 = scmp.eq.s32.totalorder %s18, 0
      %p122 = por %p120, %p121
      %p123 = scmp.ne.s32.totalorder %s115, %s117
      %p124 = scmp.eq.s32.totalorder %s23, 1
      %p125 = por %p123, %p124
      %p126 = scmp.ne.s32.totalorder %s117, %s118
      %p127 = scmp.eq.s32.totalorder %s23, 0
      %p128 = por %p126, %p127
      %p129 = scmp.ne.s32.totalorder %s117, %s118
      %p130 = scmp.eq.s32.totalorder %s24, 1
      %p131 = por %p129, %p130
      %p133 = scmp.ne.s32.totalorder %s118, %s132
      %p134 = scmp.eq.s32.totalorder %s24, 0
      %p135 = por %p133, %p134
      %s136 = ssub.s32 %s18, %s25
      %p137 = scmp.eq.s32.totalorder %s136, 0
      %s139 = sadd.s32 %s138, 1
      %s140 = scalar_select %p137, %s138, %s139
      %p143 = pneg %p137
      %p144 = scmp.eq.s32.totalorder %s18, 1
      %p145 = por %p143, %p144
      %p146 = scmp.ne.s32.totalorder %s138, %s141
      %p147 = scmp.eq.s32.totalorder %s18, 0
      %p148 = por %p146, %p147
      %p149 = scmp.ne.s32.totalorder %s138, %s141
      %p150 = scmp.eq.s32.totalorder %s23, 1
      %p151 = por %p149, %p150
      %p152 = scmp.ne.s32.totalorder %s141, %s142
      %p153 = scmp.eq.s32.totalorder %s23, 0
      %p154 = por %p152, %p153
      %p155 = scmp.ne.s32.totalorder %s141, %s142
      %p156 = scmp.eq.s32.totalorder %s24, 1
      %p157 = por %p155, %p156
      %p159 = scmp.ne.s32.totalorder %s142, %s158
      %p160 = scmp.eq.s32.totalorder %s24, 0
      %p161 = por %p159, %p160
      %p162 = scmp.le.s32.totalorder 1, %s18
      %p163 = scmp.lt.s32.totalorder %s18, 3
      %p164 = pnand %p162, %p163
      %p165 = pneg %p164
      // Predicated region
      $region9: #{tpu_custom_call.1} parent=5 // pred_check
        _
      $region10: #{tpu_custom_call.1} parent=5 // pred_check_branch
        %167 = sbr.rel (%p164) target = $region12
      $region11: #{tpu_custom_call.1} parent=5 // pred_region
        %s168 = ssub.s32 %s18, 1
        // Predicated region
        $region13: #{tpu_custom_call.1} parent=11 // pred_check
          %p169 = pneg %p65
        $region14: #{tpu_custom_call.1} parent=11 // pred_check_branch
          %171 = sbr.rel (%p169) target = $region16
        $region15: #{tpu_custom_call.1} parent=11 // pred_region
          %s173 = ssub.s32 2048, 2048
          %174 = vsyncadd [#allocation6], %s173
          %s175 = sshll.u32 [#allocation5], 4
          %s176 = int_to_ptr.vmem [resolvable:$true] %s175
          %181 = dma.hbm_to_vmem [thread:$0]  %s1, 2048, %s176, [#allocation6], 128, 128, 8
        $region16: #{tpu_custom_call.1} parent=11 // pred_fallthru
          _
        // Predicated region
        $region17: #{tpu_custom_call.1} parent=11 // pred_check
          %p182 = pneg %p86
        $region18: #{tpu_custom_call.1} parent=11 // pred_check_branch
          %184 = sbr.rel (%p182) target = $region20
        $region19: #{tpu_custom_call.1} parent=11 // pred_region
          _
        $region20: #{tpu_custom_call.1} parent=11 // pred_fallthru
          _
        // Predicated region
        $region21: #{tpu_custom_call.1} parent=11 // pred_check
          %p185 = pneg %p107
        $region22: #{tpu_custom_call.1} parent=11 // pred_check_branch
          %187 = sbr.rel (%p185) target = $region24
        $region23: #{tpu_custom_call.1} parent=11 // pred_region
          %s189 = ssub.s32 2048, 2048
          %190 = vsyncadd [#allocation6], %s189
          %s191 = sshll.u32 [#allocation7], 4
          %s192 = int_to_ptr.vmem [resolvable:$true] %s191
          %197 = dma.hbm_to_vmem [thread:$0]  %s3, 2048, %s192, [#allocation6], 128, 128, 8
        $region24: #{tpu_custom_call.1} parent=11 // pred_fallthru
          _
        // Predicated region
        $region25: #{tpu_custom_call.1} parent=11 // pred_check
          %p198 = pneg %p128
        $region26: #{tpu_custom_call.1} parent=11 // pred_check_branch
          %200 = sbr.rel (%p198) target = $region28
        $region27: #{tpu_custom_call.1} parent=11 // pred_region
          _
        $region28: #{tpu_custom_call.1} parent=11 // pred_fallthru
          _
      $region12: #{tpu_custom_call.1} parent=5 // pred_fallthru
        _
      %p201 = scmp.lt.s32.totalorder %s18, 2
      // Predicated region
      $region29: #{tpu_custom_call.1} parent=5 // pred_check
        %p202 = pneg %p201
      $region30: #{tpu_custom_call.1} parent=5 // pred_check_branch
        %204 = sbr.rel (%p202) target = $region32
      $region31: #{tpu_custom_call.1} parent=5 // pred_region
        // Predicated region
        $region33: #{tpu_custom_call.1} parent=31 // pred_check
          %p205 = pneg %p38
        $region34: #{tpu_custom_call.1} parent=31 // pred_check_branch
          %207 = sbr.rel (%p205) target = $region36
        $region35: #{tpu_custom_call.1} parent=31 // pred_region
          %s208 = sand.u32 %s28, 1
          %s209 = scalar_lea.sflag [#allocation3], %s208
          %s210 = sand.u32 %s28, 1
          %s211 = smul.addr %s210, 8
          %s212 = scalar_lea.vmem [#allocation2], %s211
          %s214 = ssub.s32 128, 128
          %215 = vsyncadd %s209, %s214
          %s216 = smul.addr %s18, 128
          %s217 = scalar_lea.hbm %s0, %s216
          %s219 = sshll.u32 %s212, 4
          %s220 = int_to_ptr.vmem [resolvable:$true] %s219
          %222 = dma.hbm_to_vmem [thread:$0]  %s217, 128, %s220, %s209
        $region36: #{tpu_custom_call.1} parent=31 // pred_fallthru
          _
      $region32: #{tpu_custom_call.1} parent=5 // pred_fallthru
        _
      %p223 = scmp.le.s32.totalorder 1, %s18
      %p224 = scmp.lt.s32.totalorder %s18, 3
      %p225 = pnand %p223, %p224
      %p226 = pneg %p225
      // Predicated region
      $region37: #{tpu_custom_call.1} parent=5 // pred_check
        _
      $region38: #{tpu_custom_call.1} parent=5 // pred_check_branch
        %228 = sbr.rel (%p225) target = $region40
      $region39: #{tpu_custom_call.1} parent=5 // pred_region
        %s229 = ssub.s32 %s18, 1
        %s230 = sand.u32 %s31, 1
        %s231 = scalar_lea.sflag [#allocation3], %s230
        %s232 = sand.u32 %s31, 1
        %s233 = smul.addr %s232, 8
        %s234 = scalar_lea.vmem [#allocation2], %s233
        // Predicated region
        $region41: #{tpu_custom_call.1} parent=39 // pred_check
          %p235 = pneg %p44
        $region42: #{tpu_custom_call.1} parent=39 // pred_check_branch
          %237 = sbr.rel (%p235) target = $region44
        $region43: #{tpu_custom_call.1} parent=39 // pred_region
          %238 = dma.done %s231, 128
        $region44: #{tpu_custom_call.1} parent=39 // pred_fallthru
          _
        // Predicated region
        $region45: #{tpu_custom_call.1} parent=39 // pred_check
          %p239 = pneg %p65
        $region46: #{tpu_custom_call.1} parent=39 // pred_check_branch
          %241 = sbr.rel (%p239) target = $region48
        $region47: #{tpu_custom_call.1} parent=39 // pred_region
          %242 = dma.done [#allocation6], 2048
        $region48: #{tpu_custom_call.1} parent=39 // pred_fallthru
          _
        // Predicated region
        $region49: #{tpu_custom_call.1} parent=39 // pred_check
          %p243 = pneg %p107
        $region50: #{tpu_custom_call.1} parent=39 // pred_check_branch
          %245 = sbr.rel (%p243) target = $region52
        $region51: #{tpu_custom_call.1} parent=39 // pred_region
          %246 = dma.done [#allocation6], 2048
        $region52: #{tpu_custom_call.1} parent=39 // pred_fallthru
          _
        %s247 = sand.u32 %s31, 1
        %s248 = scalar_lea.sflag [#allocation3], %s247
        %s249 = sand.u32 %s31, 1
        %s250 = smul.addr %s249, 8
        %s251 = scalar_lea.vmem [#allocation2], %s250
        %p252 = pneg %p44
        %p253 = pneg %p41
        %p254 = pneg %p65
        %p255 = pneg %p62
        %p256 = pneg %p86
        %p257 = pneg %p83
        %p258 = pneg %p107
        %p259 = pneg %p104
        %p260 = pneg %p128
        %p261 = pneg %p125
        %p262 = pneg %p154
        %p263 = pneg %p151
        %s264 = sand.u32 %s141, 1
        %s265 = scalar_lea.sflag [#allocation4], %s264
        %s266 = sand.u32 %s141, 1
        %s267 = smul.addr %s266, 8
        %s268 = scalar_lea.vmem [#allocation8], %s267
        %v269 = vld [vmem:[%s234] sm:$0xff]
        %v270 = vld [vmem:[#allocation5] sm:$0xff]
        %v271 = vld [vmem:[#allocation5 + $0x8] sm:$0xff]
        %v272 = vld [vmem:[#allocation5 + $0x10] sm:$0xff]
        %v273 = vld [vmem:[#allocation5 + $0x18] sm:$0xff]
        %v274 = vld [vmem:[#allocation5 + $0x20] sm:$0xff]
        %v275 = vld [vmem:[#allocation5 + $0x28] sm:$0xff]
        %v276 = vld [vmem:[#allocation5 + $0x30] sm:$0xff]
        %v277 = vld [vmem:[#allocation5 + $0x38] sm:$0xff]
        %v278 = vld [vmem:[#allocation5 + $0x40] sm:$0xff]
        %v279 = vld [vmem:[#allocation5 + $0x48] sm:$0xff]
        %v280 = vld [vmem:[#allocation5 + $0x50] sm:$0xff]
        %v281 = vld [vmem:[#allocation5 + $0x58] sm:$0xff]
        %v282 = vld [vmem:[#allocation5 + $0x60] sm:$0xff]
        %v283 = vld [vmem:[#allocation5 + $0x68] sm:$0xff]
        %v284 = vld [vmem:[#allocation5 + $0x70] sm:$0xff]
        %v285 = vld [vmem:[#allocation5 + $0x78] sm:$0xff]
        %v286 = vld [vmem:[%s2] sm:$0x1]
        %v288 = vlaneseq
        %v289 = vshrl.u32 %v288, 7
        %v290 = vsub.s32 0, %v289
        %v291 = vrot.slane %v286, %v290
        %293 = vmatprep.subr.mxu0 0.0
        %294 = vmatpush1.msra.mxu0 %v270
        %295 = vmatprep.subr.mxu0 0.0
        %296 = vmatpush1.msra.mxu0 %v271
        %297 = vmatprep.subr.mxu0 0.0
        %298 = vmatpush1.msra.mxu0 %v272
        %299 = vmatprep.subr.mxu0 0.0
        %300 = vmatpush1.msra.mxu0 %v273
        %301 = vmatprep.subr.mxu0 0.0
        %302 = vmatpush1.msra.mxu0 %v274
        %303 = vmatprep.subr.mxu0 0.0
        %304 = vmatpush1.msra.mxu0 %v275
        %305 = vmatprep.subr.mxu0 0.0
        %306 = vmatpush1.msra.mxu0 %v276
        %307 = vmatprep.subr.mxu0 0.0
        %308 = vmatpush1.msra.mxu0 %v277
        %309 = vmatprep.subr.mxu0 0.0
        %310 = vmatpush1.msra.mxu0 %v278
        %311 = vmatprep.subr.mxu0 0.0
        %312 = vmatpush1.msra.mxu0 %v279
        %313 = vmatprep.subr.mxu0 0.0
        %314 = vmatpush1.msra.mxu0 %v280
        %315 = vmatprep.subr.mxu0 0.0
        %316 = vmatpush1.msra.mxu0 %v281
        %317 = vmatprep.subr.mxu0 0.0
        %318 = vmatpush1.msra.mxu0 %v282
        %319 = vmatprep.subr.mxu0 0.0
        %320 = vmatpush1.msra.mxu0 %v283
        %321 = vmatprep.subr.mxu0 0.0
        %322 = vmatpush1.msra.mxu0 %v284
        %323 = vmatprep.subr.mxu0 0.0
        %324 = vmatpush1.msra.mxu0 %v285
        %325 = vmatprep.subr.mxu0 0.0
        %326 = vmatpush1.msra.mxu0 0.0
        %327 = vmatprep.subr.mxu0 0.0
        %328 = vmatpush1.msra.mxu0 0.0
        %329 = vmatprep.subr.mxu0 0.0
        %330 = vmatpush1.msra.mxu0 0.0
        %331 = vmatprep.subr.mxu0 0.0
        %332 = vmatpush1.msra.mxu0 0.0
        %333 = vmatprep.subr.mxu0 0.0
        %334 = vmatpush1.msra.mxu0 0.0
        %335 = vmatprep.subr.mxu0 0.0
        %336 = vmatpush1.msra.mxu0 0.0
        %337 = vmatprep.subr.mxu0 0.0
        %338 = vmatpush1.msra.mxu0 0.0
        %339 = vmatprep.subr.mxu0 0.0
        %340 = vmatpush1.msra.mxu0 0.0
        %341 = vmatprep.subr.mxu0 0.0
        %342 = vmatpush1.msra.mxu0 0.0
        %343 = vmatprep.subr.mxu0 0.0
        %344 = vmatpush1.msra.mxu0 0.0
        %345 = vmatprep.subr.mxu0 0.0
        %346 = vmatpush1.msra.mxu0 0.0
        %347 = vmatprep.subr.mxu0 0.0
        %348 = vmatpush1.msra.mxu0 0.0
        %349 = vmatprep.subr.mxu0 0.0
        %350 = vmatpush1.msra.mxu0 0.0
        %351 = vmatprep.subr.mxu0 0.0
        %352 = vmatpush1.msra.mxu0 0.0
        %353 = vmatprep.subr.mxu0 0.0
        %354 = vmatpush1.msra.mxu0 0.0
        %355 = vmatprep.subr.mxu0 0.0
        %356 = vmatpush1.msra.mxu0 0.0
        %357 = vmatprep.mubr.f32.mxu0 0.0
        %358 = vmatmul.mubr.f32.gmra.mrb[0].mxu0 %v269
        %v359 = vpop.f32.mrb[0].mxu0
        %v360 = vadd.f32 %v291, %v359
        %v361 = vpop.f32.mrb[0].mxu0
        %362 = vdwg.mxu0
        %v363 = vmax.f32 %v360, 0.0
        %v364 = vld [vmem:[#allocation7] sm:$0xff]
        %v365 = vld [vmem:[#allocation7 + $0x8] sm:$0xff]
        %v366 = vld [vmem:[#allocation7 + $0x10] sm:$0xff]
        %v367 = vld [vmem:[#allocation7 + $0x18] sm:$0xff]
        %v368 = vld [vmem:[#allocation7 + $0x20] sm:$0xff]
        %v369 = vld [vmem:[#allocation7 + $0x28] sm:$0xff]
        %v370 = vld [vmem:[#allocation7 + $0x30] sm:$0xff]
        %v371 = vld [vmem:[#allocation7 + $0x38] sm:$0xff]
        %v372 = vld [vmem:[#allocation7 + $0x40] sm:$0xff]
        %v373 = vld [vmem:[#allocation7 + $0x48] sm:$0xff]
        %v374 = vld [vmem:[#allocation7 + $0x50] sm:$0xff]
        %v375 = vld [vmem:[#allocation7 + $0x58] sm:$0xff]
        %v376 = vld [vmem:[#allocation7 + $0x60] sm:$0xff]
        %v377 = vld [vmem:[#allocation7 + $0x68] sm:$0xff]
        %v378 = vld [vmem:[#allocation7 + $0x70] sm:$0xff]
        %v379 = vld [vmem:[#allocation7 + $0x78] sm:$0xff]
        %v380 = vld [vmem:[%s4] sm:$0x1]
        %v381 = vlaneseq
        %v382 = vshrl.u32 %v381, 7
        %v383 = vsub.s32 0, %v382
        %v384 = vrot.slane %v380, %v383
        %385 = vmatprep.subr.mxu0 0.0
        %386 = vmatpush1.msra.mxu0 %v364
        %387 = vmatprep.subr.mxu0 0.0
        %388 = vmatpush1.msra.mxu0 %v365
        %389 = vmatprep.subr.mxu0 0.0
        %390 = vmatpush1.msra.mxu0 %v366
        %391 = vmatprep.subr.mxu0 0.0
        %392 = vmatpush1.msra.mxu0 %v367
        %393 = vmatprep.subr.mxu0 0.0
        %394 = vmatpush1.msra.mxu0 %v368
        %395 = vmatprep.subr.mxu0 0.0
        %396 = vmatpush1.msra.mxu0 %v369
        %397 = vmatprep.subr.mxu0 0.0
        %398 = vmatpush1.msra.mxu0 %v370
        %399 = vmatprep.subr.mxu0 0.0
        %400 = vmatpush1.msra.mxu0 %v371
        %401 = vmatprep.subr.mxu0 0.0
        %402 = vmatpush1.msra.mxu0 %v372
        %403 = vmatprep.subr.mxu0 0.0
        %404 = vmatpush1.msra.mxu0 %v373
        %405 = vmatprep.subr.mxu0 0.0
        %406 = vmatpush1.msra.mxu0 %v374
        %407 = vmatprep.subr.mxu0 0.0
        %408 = vmatpush1.msra.mxu0 %v375
        %409 = vmatprep.subr.mxu0 0.0
        %410 = vmatpush1.msra.mxu0 %v376
        %411 = vmatprep.subr.mxu0 0.0
        %412 = vmatpush1.msra.mxu0 %v377
        %413 = vmatprep.subr.mxu0 0.0
        %414 = vmatpush1.msra.mxu0 %v378
        %415 = vmatprep.subr.mxu0 0.0
        %416 = vmatpush1.msra.mxu0 %v379
        %417 = vmatprep.subr.mxu0 0.0
        %418 = vmatpush1.msra.mxu0 0.0
        %419 = vmatprep.subr.mxu0 0.0
        %420 = vmatpush1.msra.mxu0 0.0
        %421 = vmatprep.subr.mxu0 0.0
        %422 = vmatpush1.msra.mxu0 0.0
        %423 = vmatprep.subr.mxu0 0.0
        %424 = vmatpush1.msra.mxu0 0.0
        %425 = vmatprep.subr.mxu0 0.0
        %426 = vmatpush1.msra.mxu0 0.0
        %427 = vmatprep.subr.mxu0 0.0
        %428 = vmatpush1.msra.mxu0 0.0
        %429 = vmatprep.subr.mxu0 0.0
        %430 = vmatpush1.msra.mxu0 0.0
        %431 = vmatprep.subr.mxu0 0.0
        %432 = vmatpush1.msra.mxu0 0.0
        %433 = vmatprep.subr.mxu0 0.0
        %434 = vmatpush1.msra.mxu0 0.0
        %435 = vmatprep.subr.mxu0 0.0
        %436 = vmatpush1.msra.mxu0 0.0
        %437 = vmatprep.subr.mxu0 0.0
        %438 = vmatpush1.msra.mxu0 0.0
        %439 = vmatprep.subr.mxu0 0.0
        %440 = vmatpush1.msra.mxu0 0.0
        %441 = vmatprep.subr.mxu0 0.0
        %442 = vmatpush1.msra.mxu0 0.0
        %443 = vmatprep.subr.mxu0 0.0
        %444 = vmatpush1.msra.mxu0 0.0
        %445 = vmatprep.subr.mxu0 0.0
        %446 = vmatpush1.msra.mxu0 0.0
        %447 = vmatprep.subr.mxu0 0.0
        %448 = vmatpush1.msra.mxu0 0.0
        %449 = vmatprep.mubr.f32.mxu0 0.0
        %450 = vmatmul.mubr.f32.gmra.mrb[0].mxu0 %v363
        %v451 = vpop.f32.mrb[0].mxu0
        %v452 = vadd.f32 %v384, %v451
        %v453 = vpop.f32.mrb[0].mxu0
        %454 = vdwg.mxu0
        %v455 = vadd.f32 %v452, %v269
        %v456 = vlaneseq
        %v457 = vand.u32 %v456, 127
        %vm458 = vcmp.lt.s32.totalorder %v457, 32
        %v459 = vsel %vm458, 1, 0
        %vm460 = vcmp.eq.s32.totalorder %v459, 1
        %v461 = vsel %vm460, %v455, 0.0
        %462 = vadd.xlane.f32.xlu0 %v461
        %v463 = vpop.xlane.xlu0 %462
        %v464 = vmul.f32 %v463, 0.03125
        %v465 = vsub.f32 %v461, %v464
        %v466 = vsel %vm460, %v465, 0.0
        %v467 = vmul.f32 %v466, %v466
        %468 = vadd.xlane.f32.xlu0 %v467
        %v469 = vpop.xlane.xlu0 %468
        %v470 = vmul.f32 %v469, 0.03125
        %v471 = vadd.f32 %v470, 1e-05
        %v472 = vrsqrt.pop %v471
        %v473 = vmul.f32 %v466, %v472
        %v474 = vld [vmem:[%s4 + $0x1] sm:$0x1]
        %v475 = vlaneseq
        %v476 = vshrl.u32 %v475, 7
        %v477 = vsub.s32 0, %v476
        %v478 = vrot.slane %v474, %v477
        %v479 = vmul.f32 %v473, %v478
        %v480 = vld [vmem:[%s4 + $0x2] sm:$0x1]
        %v481 = vlaneseq
        %v482 = vshrl.u32 %v481, 7
        %v483 = vsub.s32 0, %v482
        %v484 = vrot.slane %v480, %v483
        %v485 = vadd.f32 %v479, %v484
        %486 = vst [vmem:[%s268] sm:$0xff] %v485
        %s487 = sand.u32 %s141, 1
        %s488 = scalar_lea.sflag [#allocation4], %s487
        %s489 = sand.u32 %s141, 1
        %s490 = smul.addr %s489, 8
        %s491 = scalar_lea.vmem [#allocation8], %s490
        // Predicated region
        $region53: #{tpu_custom_call.1} parent=39 // pred_check
          %p492 = pneg %p151
        $region54: #{tpu_custom_call.1} parent=39 // pred_check_branch
          %494 = sbr.rel (%p492) target = $region56
        $region55: #{tpu_custom_call.1} parent=39 // pred_region
          %s496 = ssub.s32 128, 128
          %497 = vsyncadd %s488, %s496
          %s498 = smul.addr %s23, 128
          %s499 = scalar_lea.hbm %s5, %s498
          %s501 = sshll.u32 %s491, 4
          %s502 = int_to_ptr.vmem [resolvable:$true] %s501
          %504 = dma.vmem_to_hbm [thread:$0]  %s502, 128, %s499, %s488
        $region56: #{tpu_custom_call.1} parent=39 // pred_fallthru
          _
      $region40: #{tpu_custom_call.1} parent=5 // pred_fallthru
        _
      %p505 = scmp.le.s32.totalorder 2, %s18
      // Predicated region
      $region57: #{tpu_custom_call.1} parent=5 // pred_check
        %p506 = pneg %p505
      $region58: #{tpu_custom_call.1} parent=5 // pred_check_branch
        %508 = sbr.rel (%p506) target = $region60
      $region59: #{tpu_custom_call.1} parent=5 // pred_region
        %s509 = ssub.s32 %s18, 2
        // Predicated region
        $region61: #{tpu_custom_call.1} parent=59 // pred_check
          %p510 = pneg %p157
        $region62: #{tpu_custom_call.1} parent=59 // pred_check_branch
          %512 = sbr.rel (%p510) target = $region64
        $region63: #{tpu_custom_call.1} parent=59 // pred_region
          %s513 = sand.u32 %s142, 1
          %s514 = scalar_lea.sflag [#allocation4], %s513
          %s515 = sand.u32 %s142, 1
          %s516 = smul.addr %s515, 8
          %s517 = scalar_lea.vmem [#allocation8], %s516
          %518 = dma.done %s514, 128
        $region64: #{tpu_custom_call.1} parent=59 // pred_fallthru
          _
      $region60: #{tpu_custom_call.1} parent=5 // pred_fallthru
        _
    $region6: #{tpu_custom_call.1} parent=1 // loop_footer
      %s22 = sadd.s32 1, %s18
    $region7: #{tpu_custom_call.1} parent=1 // loop_footer_branch
      %17 = sbr.rel target = $region3
    $region8: #{tpu_custom_call.1} parent=1 // loop_exit
      _
    %519 = vsyncpa [#allocation3], 1
    %s520 = scalar_lea.sflag [#allocation3], 1
    %521 = vsyncpa %s520, 1
    %522 = vsyncpa [#allocation6], 1
    %523 = vsyncpa [#allocation4], 1
    %s524 = scalar_lea.sflag [#allocation4], 1
    %525 = vsyncpa %s524, 1

</llo_original>
